<compile_context>
chip_gen: v7x
topology: tpu7x:2x2x1
jax: 0.10.0
libtpu: 0.0.40
codegen_flags: <defaults>
</compile_context>

<pallas_src>
import functools

import jax
import jax.numpy as jnp
import numpy as np
from jax import lax
from jax.experimental import pallas as pl
from jax.experimental.pallas import tpu as pltpu


# ----------------------------------------------------------------------------
# Pallas kernel: upsample(+pad) -> concat -> (3x3 conv -> BN(folded) -> ReLU) x 2
# ----------------------------------------------------------------------------
def _up_double_conv_kernel(x1_ref, x2_ref, up_ref, mask_ref,
                           w1_ref, b1_ref, w2_ref, b2_ref, o_ref, *, W):
    # x1_ref   : (C1, H1*W1)       decoder feature for this batch element
    # x2_ref   : (C2, L)           skip connection, L = H2*W2 lanes
    # up_ref   : (H1*W1, L)        kron(A_h, A_w): bilinear x2 upsample + diff pad
    # mask_ref : (9, L)            edge-tap masks, tap index k = (dy+1)*3 + (dx+1)
    # w1_ref   : (Cmid_p, 9*Cin)   conv1 weight (BN1 scale folded), tap-major contraction
    # b1_ref   : (Cmid_p, 1)       folded BN1 shift
    # w2_ref   : (Cout_p, 9*Cmid_p) conv2 weight (BN2 scale folded)
    # b2_ref   : (Cout_p, 1)       folded BN2 shift
    # o_ref    : (Cout_p, L)
    L = o_ref.shape[-1]

    def im2col(v):
        # (C, L) -> (9*C, L): 9 taps stacked along the contraction (sublane) dim.
        # The lane roll wraps only at positions the precomputed edge mask zeroes.
        cols = []
        for k in range(9):
            dy, dx = k // 3 - 1, k % 3 - 1
            d = dy * W + dx
            r = v if d == 0 else pltpu.roll(v, (-d) % L, axis=1)
            if k != 4:  # center tap needs no mask
                r = r * mask_ref[pl.ds(k, 1), :]
            cols.append(r)
        return jnp.concatenate(cols, axis=0)

    # bilinear x2 upsample + diff pad as one MXU matmul (stays in VMEM)
    x1u = jnp.dot(x1_ref[...], up_ref[...], preferred_element_type=jnp.float32)

    # channel concat [x2, x1_up] once, in VMEM
    x = jnp.concatenate([x2_ref[...], x1u], axis=0)                  # (Cin, L)

    # conv1 (+ folded BN1) + ReLU : single matmul, K = 9*Cin
    h1 = jnp.dot(w1_ref[...], im2col(x), preferred_element_type=jnp.float32)
    h1 = jnp.maximum(h1 + b1_ref[...], 0.0)                          # (Cmid_p, L)

    # conv2 (+ folded BN2) + ReLU : single matmul, K = 9*Cmid_p
    h2 = jnp.dot(w2_ref[...], im2col(h1), preferred_element_type=jnp.float32)
    o_ref[...] = jnp.maximum(h2 + b2_ref[...], 0.0).astype(o_ref.dtype)


# ----------------------------------------------------------------------------
# Host-side constants (numpy): interpolation matrix and edge masks
# ----------------------------------------------------------------------------
def _interp_matrix_np(in_size, pad_before, pad_after):
    """Rows = bilinear x2 upsample (align_corners=True) plus zero rows for F.pad."""
    out_core = 2 * in_size
    total = pad_before + out_core + pad_after
    A = np.zeros((total, in_size), np.float32)
    scale = (in_size - 1) / (out_core - 1) if out_core > 1 else 0.0
    for o in range(out_core):
        src = o * scale
        lo = int(np.floor(src))
        hi = min(lo + 1, in_size - 1)
        w = src - lo
        A[pad_before + o, lo] += 1.0 - w
        if hi != lo:
            A[pad_before + o, hi] += w
    return A


def _edge_masks_np(H, W):
    """(9, H*W) masks: mask[k] zeroes lanes whose (dy, dx) tap falls outside the image."""
    yy, xx = np.meshgrid(np.arange(H), np.arange(W), indexing="ij")
    yy = yy.reshape(-1)
    xx = xx.reshape(-1)
    masks = np.ones((9, H * W), np.float32)
    for k in range(9):
        dy, dx = k // 3 - 1, k % 3 - 1
        valid = np.ones(H * W, bool)
        if dy < 0:
            valid &= yy >= -dy
        if dy > 0:
            valid &= yy < H - dy
        if dx < 0:
            valid &= xx >= -dx
        if dx > 0:
            valid &= xx < W - dx
        masks[k] = valid.astype(np.float32)
    return masks


# ----------------------------------------------------------------------------
# Wrapper: weight folding / packing + pallas_call
# ----------------------------------------------------------------------------
def up_forward(x1, x2, params):
    """Forward of Up(bilinear=True): upsample x1, pad to x2, concat, DoubleConv."""
    N, C1, H1, W1 = x1.shape
    N2, C2, H2, W2 = x2.shape
    assert N2 == N
    diffY = H2 - 2 * H1
    diffX = W2 - 2 * W1
    # TODO(synk): negative diffX/diffY (cropping inside F.pad) is not handled here.
    assert diffY >= 0 and diffX >= 0

    w1, s1, b1 = params["w1"], params["s1"], params["b1"]
    w2, s2, b2 = params["w2"], params["s2"], params["b2"]
    Cmid, Cin = w1.shape[0], w1.shape[1]
    Cout = w2.shape[0]
    assert Cin == C1 + C2 and w2.shape[1] == Cmid

    # pad mid/out channel dims to sublane multiples: 8-aligned im2col slabs for conv2
    # and unmasked (full-vreg-height) output stores.
    Cmid_p = ((Cmid + 7) // 8) * 8
    Cout_p = ((Cout + 7) // 8) * 8

    # fold eval-mode BN scale into conv weights; repack to (Co, 9*Ci) with tap-major /
    # channel-minor contraction order (matches the in-kernel im2col).
    w1f = w1 * s1[:, None, None, None]                               # (Cmid, Cin, 3, 3)
    l1 = jnp.transpose(w1f, (0, 2, 3, 1)).reshape(Cmid, 9 * Cin)
    l1 = jnp.pad(l1, ((0, Cmid_p - Cmid), (0, 0)))
    b1c = jnp.pad(b1.reshape(Cmid, 1), ((0, Cmid_p - Cmid), (0, 0)))

    w2f = w2 * s2[:, None, None, None]                               # (Cout, Cmid, 3, 3)
    w2f = jnp.pad(w2f, ((0, Cout_p - Cout), (0, Cmid_p - Cmid), (0, 0), (0, 0)))
    l2 = jnp.transpose(w2f, (0, 2, 3, 1)).reshape(Cout_p, 9 * Cmid_p)
    b2c = jnp.pad(b2.reshape(Cout, 1), ((0, Cout_p - Cout), (0, 0)))

    # host-side constants: fused (upsample + pad) operator and im2col edge masks
    A_h = _interp_matrix_np(H1, diffY // 2, diffY - diffY // 2)      # (H2, H1)
    A_w = _interp_matrix_np(W1, diffX // 2, diffX - diffX // 2)      # (W2, W1)
    up_mat = jnp.asarray(
        np.einsum("Hh,Ww->hwHW", A_h, A_w).reshape(H1 * W1, H2 * W2))
    masks = jnp.asarray(_edge_masks_np(H2, W2))                      # (9, H2*W2)

    x1r = x1.reshape(N, C1, H1 * W1)
    x2r = x2.reshape(N, C2, H2 * W2)

    L = H2 * W2
    kernel = functools.partial(_up_double_conv_kernel, W=W2)

    out = pl.pallas_call(
        kernel,
        out_shape=jax.ShapeDtypeStruct((N, Cout_p, L), jnp.float32),
        grid=(N,),
        in_specs=[
            pl.BlockSpec((None, C1, H1 * W1), lambda n: (n, 0, 0)),
            pl.BlockSpec((None, C2, L), lambda n: (n, 0, 0)),
            pl.BlockSpec((H1 * W1, L), lambda n: (0, 0)),
            pl.BlockSpec((9, L), lambda n: (0, 0)),
            pl.BlockSpec((Cmid_p, 9 * Cin), lambda n: (0, 0)),
            pl.BlockSpec((Cmid_p, 1), lambda n: (0, 0)),
            pl.BlockSpec((Cout_p, 9 * Cmid_p), lambda n: (0, 0)),
            pl.BlockSpec((Cout_p, 1), lambda n: (0, 0)),
        ],
        out_specs=pl.BlockSpec((None, Cout_p, L), lambda n: (n, 0, 0)),
        compiler_params=pltpu.CompilerParams(
            dimension_semantics=("parallel",)),
    )(x1r, x2r, up_mat, masks, l1, b1c, l2, b2c)

    return out.reshape(N, Cout_p, H2, W2)[:, :Cout]


# ----------------------------------------------------------------------------
# Pure-JAX reference (correctness sanity check)
# ----------------------------------------------------------------------------
def bilinear_up2_align_corners(x):
    N, C, H, W = x.shape
    Ho, Wo = 2 * H, 2 * W

    def coords(out_size, in_size):
        if out_size == 1:
            return jnp.zeros((out_size,), jnp.float32)
        return jnp.arange(out_size, dtype=jnp.float32) * (in_size - 1) / (out_size - 1)

    ys = coords(Ho, H)
    xs = coords(Wo, W)
    y0 = jnp.floor(ys).astype(jnp.int32)
    x0 = jnp.floor(xs).astype(jnp.int32)
    y1 = jnp.minimum(y0 + 1, H - 1)
    x1 = jnp.minimum(x0 + 1, W - 1)
    wy = (ys - y0.astype(jnp.float32))[None, None, :, None]
    wx = (xs - x0.astype(jnp.float32))[None, None, None, :]

    g00 = x[:, :, y0, :][:, :, :, x0]
    g01 = x[:, :, y0, :][:, :, :, x1]
    g10 = x[:, :, y1, :][:, :, :, x0]
    g11 = x[:, :, y1, :][:, :, :, x1]
    return (g00 * (1 - wy) * (1 - wx) + g01 * (1 - wy) * wx +
            g10 * wy * (1 - wx) + g11 * wy * wx)


def double_conv_ref(x, w1, s1, b1, w2, s2, b2):
    dn = ("NCHW", "OIHW", "NCHW")
    h = lax.conv_general_dilated(x, w1, (1, 1), "SAME", dimension_numbers=dn,
                                 precision=lax.Precision.HIGHEST)
    h = jnp.maximum(h * s1[None, :, None, None] + b1[None, :, None, None], 0.0)
    h = lax.conv_general_dilated(h, w2, (1, 1), "SAME", dimension_numbers=dn,
                                 precision=lax.Precision.HIGHEST)
    return jnp.maximum(h * s2[None, :, None, None] + b2[None, :, None, None], 0.0)


# ----------------------------------------------------------------------------
# Main
# ----------------------------------------------------------------------------
if __name__ == "__main__":
    # Up(in_channels=8, out_channels=4, bilinear=True)
    in_channels, out_channels = 8, 4
    mid_channels = in_channels // 2  # DoubleConv(in, out, in//2)
    eps = 1e-5

    key = jax.random.PRNGKey(0)
    k = jax.random.split(key, 12)

    N = 2
    # x1: decoder feature (in_channels // 2 channels, half spatial), x2: skip connection
    x1 = jax.random.normal(k[0], (N, in_channels // 2, 8, 8), jnp.float32)
    x2 = jax.random.normal(k[1], (N, in_channels // 2, 16, 16), jnp.float32)

    # deterministic parameters (conv weights + eval-mode BN folded into scale/shift)
    w1 = jax.random.normal(k[2], (mid_channels, in_channels, 3, 3), jnp.float32) * 0.2
    w2 = jax.random.normal(k[3], (out_channels, mid_channels, 3, 3), jnp.float32) * 0.2
    g1 = 1.0 + 0.1 * jax.random.normal(k[4], (mid_channels,), jnp.float32)
    be1 = 0.1 * jax.random.normal(k[5], (mid_channels,), jnp.float32)
    rm1 = 0.1 * jax.random.normal(k[6], (mid_channels,), jnp.float32)
    rv1 = 1.0 + 0.1 * jax.random.uniform(k[7], (mid_channels,), jnp.float32)
    g2 = 1.0 + 0.1 * jax.random.normal(k[8], (out_channels,), jnp.float32)
    be2 = 0.1 * jax.random.normal(k[9], (out_channels,), jnp.float32)
    rm2 = 0.1 * jax.random.normal(k[10], (out_channels,), jnp.float32)
    rv2 = 1.0 + 0.1 * jax.random.uniform(k[11], (out_channels,), jnp.float32)

    s1 = g1 / jnp.sqrt(rv1 + eps)
    b1 = be1 - rm1 * s1
    s2 = g2 / jnp.sqrt(rv2 + eps)
    b2 = be2 - rm2 * s2

    params = dict(w1=w1, s1=s1, b1=b1, w2=w2, s2=s2, b2=b2)

    out = jax.jit(functools.partial(up_forward, params=params))(x1, x2)
    out = jax.block_until_ready(out)

    # sanity check against the pure-JAX reference
    x1u = bilinear_up2_align_corners(x1)
    diffY = x2.shape[2] - x1u.shape[2]
    diffX = x2.shape[3] - x1u.shape[3]
    x1u = jnp.pad(x1u, ((0, 0), (0, 0),
                        (diffY // 2, diffY - diffY // 2),
                        (diffX // 2, diffX - diffX // 2)))
    x_cat = jnp.concatenate([x2, x1u], axis=1)
    ref = double_conv_ref(x_cat, w1, s1, b1, w2, s2, b2)
    np.testing.assert_allclose(np.asarray(out), np.asarray(ref), rtol=2e-3, atol=2e-3)

    print("KERNEL_OK")
</pallas_src>

<mosaic_0001>
module attributes {stable_mosaic.version = 11 : i64} {
  func.func @_up_double_conv_kernel(%arg0: i32, %arg1: memref<1x4x64xf32, #tpu.memory_space<vmem>>, %arg2: memref<1x4x256xf32, #tpu.memory_space<vmem>>, %arg3: memref<64x256xf32, #tpu.memory_space<vmem>>, %arg4: memref<9x256xf32, #tpu.memory_space<vmem>>, %arg5: memref<8x72xf32, #tpu.memory_space<vmem>>, %arg6: memref<8x1xf32, #tpu.memory_space<vmem>>, %arg7: memref<8x72xf32, #tpu.memory_space<vmem>>, %arg8: memref<8x1xf32, #tpu.memory_space<vmem>>, %arg9: memref<1x8x256xf32, #tpu.memory_space<vmem>>) attributes {dimension_semantics = [#tpu.dimension_semantics<parallel>], iteration_bounds = array<i64: 2>, scalar_prefetch = 0 : i64, scratch_operands = 0 : i64, tpu.core_type = #tpu.core_type<tc>, window_params = [{transform_indices = @transform_0, window_bounds = array<i64: 1, 4, 64>}, {transform_indices = @transform_1, window_bounds = array<i64: 1, 4, 256>}, {pipeline_mode = #tpu.pipeline_mode<synchronous>, transform_indices = @transform_2, window_bounds = array<i64: 64, 256>}, {pipeline_mode = #tpu.pipeline_mode<synchronous>, transform_indices = @transform_3, window_bounds = array<i64: 9, 256>}, {pipeline_mode = #tpu.pipeline_mode<synchronous>, transform_indices = @transform_4, window_bounds = array<i64: 8, 72>}, {pipeline_mode = #tpu.pipeline_mode<synchronous>, transform_indices = @transform_5, window_bounds = array<i64: 8, 1>}, {pipeline_mode = #tpu.pipeline_mode<synchronous>, transform_indices = @transform_6, window_bounds = array<i64: 8, 72>}, {pipeline_mode = #tpu.pipeline_mode<synchronous>, transform_indices = @transform_7, window_bounds = array<i64: 8, 1>}, {transform_indices = @transform_8, window_bounds = array<i64: 1, 8, 256>}]} {
    %c0 = arith.constant 0 : index
    %c0_0 = arith.constant 0 : index
    %c0_1 = arith.constant 0 : index
    %0 = vector.load %arg1[%c0, %c0_0, %c0_1] : memref<1x4x64xf32, #tpu.memory_space<vmem>>, vector<1x4x64xf32>
    %1 = vector.shape_cast %0 : vector<1x4x64xf32> to vector<4x64xf32>
    %c0_2 = arith.constant 0 : index
    %c0_3 = arith.constant 0 : index
    %2 = vector.load %arg3[%c0_2, %c0_3] : memref<64x256xf32, #tpu.memory_space<vmem>>, vector<64x256xf32>
    %cst = arith.constant dense<0.000000e+00> : vector<4x256xf32>
    %3 = tpu.matmul %1, %2, %cst {dimension_numbers = #tpu.dot_dimension_numbers<[1], [0], [0], [1], [0, 0, 1, 1], [], []>} : vector<4x64xf32>, vector<64x256xf32>, vector<4x256xf32> -> vector<4x256xf32>
    %c0_4 = arith.constant 0 : index
    %c0_5 = arith.constant 0 : index
    %c0_6 = arith.constant 0 : index
    %4 = vector.load %arg2[%c0_4, %c0_5, %c0_6] : memref<1x4x256xf32, #tpu.memory_space<vmem>>, vector<1x4x256xf32>
    %5 = vector.shape_cast %4 : vector<1x4x256xf32> to vector<4x256xf32>
    %6 = tpu.concatenate %5, %3 in 0 : vector<4x256xf32>, vector<4x256xf32> -> vector<8x256xf32>
    %c0_7 = arith.constant 0 : index
    %c0_8 = arith.constant 0 : index
    %7 = vector.load %arg5[%c0_7, %c0_8] : memref<8x72xf32, #tpu.memory_space<vmem>>, vector<8x72xf32>
    %c17_i32 = arith.constant 17 : i32
    %8 = tpu.dynamic_rotate %6 by %c17_i32 dim 1 : vector<8x256xf32>, i32 -> vector<8x256xf32>
    %c0_9 = arith.constant 0 : index
    %c0_10 = arith.constant 0 : index
    %9 = vector.load %arg4[%c0_9, %c0_10] : memref<9x256xf32, #tpu.memory_space<vmem>>, vector<1x256xf32>
    %10 = vector.broadcast %9 : vector<1x256xf32> to vector<8x256xf32>
    %11 = arith.mulf %8, %10 : vector<8x256xf32>
    %c16_i32 = arith.constant 16 : i32
    %12 = tpu.dynamic_rotate %6 by %c16_i32 dim 1 : vector<8x256xf32>, i32 -> vector<8x256xf32>
    %c1 = arith.constant 1 : index
    %c0_11 = arith.constant 0 : index
    %13 = vector.load %arg4[%c1, %c0_11] : memref<9x256xf32, #tpu.memory_space<vmem>>, vector<1x256xf32>
    %14 = vector.broadcast %13 : vector<1x256xf32> to vector<8x256xf32>
    %15 = arith.mulf %12, %14 : vector<8x256xf32>
    %c15_i32 = arith.constant 15 : i32
    %16 = tpu.dynamic_rotate %6 by %c15_i32 dim 1 : vector<8x256xf32>, i32 -> vector<8x256xf32>
    %c2 = arith.constant 2 : index
    %c0_12 = arith.constant 0 : index
    %17 = vector.load %arg4[%c2, %c0_12] : memref<9x256xf32, #tpu.memory_space<vmem>>, vector<1x256xf32>
    %18 = vector.broadcast %17 : vector<1x256xf32> to vector<8x256xf32>
    %19 = arith.mulf %16, %18 : vector<8x256xf32>
    %c1_i32 = arith.constant 1 : i32
    %20 = tpu.dynamic_rotate %6 by %c1_i32 dim 1 : vector<8x256xf32>, i32 -> vector<8x256xf32>
    %c3 = arith.constant 3 : index
    %c0_13 = arith.constant 0 : index
    %21 = vector.load %arg4[%c3, %c0_13] : memref<9x256xf32, #tpu.memory_space<vmem>>, vector<1x256xf32>
    %22 = vector.broadcast %21 : vector<1x256xf32> to vector<8x256xf32>
    %23 = arith.mulf %20, %22 : vector<8x256xf32>
    %c255_i32 = arith.constant 255 : i32
    %24 = tpu.dynamic_rotate %6 by %c255_i32 dim 1 : vector<8x256xf32>, i32 -> vector<8x256xf32>
    %c5 = arith.constant 5 : index
    %c0_14 = arith.constant 0 : index
    %25 = vector.load %arg4[%c5, %c0_14] : memref<9x256xf32, #tpu.memory_space<vmem>>, vector<1x256xf32>
    %26 = vector.broadcast %25 : vector<1x256xf32> to vector<8x256xf32>
    %27 = arith.mulf %24, %26 : vector<8x256xf32>
    %c241_i32 = arith.constant 241 : i32
    %28 = tpu.dynamic_rotate %6 by %c241_i32 dim 1 : vector<8x256xf32>, i32 -> vector<8x256xf32>
    %c6 = arith.constant 6 : index
    %c0_15 = arith.constant 0 : index
    %29 = vector.load %arg4[%c6, %c0_15] : memref<9x256xf32, #tpu.memory_space<vmem>>, vector<1x256xf32>
    %30 = vector.broadcast %29 : vector<1x256xf32> to vector<8x256xf32>
    %31 = arith.mulf %28, %30 : vector<8x256xf32>
    %c240_i32 = arith.constant 240 : i32
    %32 = tpu.dynamic_rotate %6 by %c240_i32 dim 1 : vector<8x256xf32>, i32 -> vector<8x256xf32>
    %c7 = arith.constant 7 : index
    %c0_16 = arith.constant 0 : index
    %33 = vector.load %arg4[%c7, %c0_16] : memref<9x256xf32, #tpu.memory_space<vmem>>, vector<1x256xf32>
    %34 = vector.broadcast %33 : vector<1x256xf32> to vector<8x256xf32>
    %35 = arith.mulf %32, %34 : vector<8x256xf32>
    %c239_i32 = arith.constant 239 : i32
    %36 = tpu.dynamic_rotate %6 by %c239_i32 dim 1 : vector<8x256xf32>, i32 -> vector<8x256xf32>
    %c8 = arith.constant 8 : index
    %c0_17 = arith.constant 0 : index
    %37 = vector.load %arg4[%c8, %c0_17] : memref<9x256xf32, #tpu.memory_space<vmem>>, vector<1x256xf32>
    %38 = vector.broadcast %37 : vector<1x256xf32> to vector<8x256xf32>
    %39 = arith.mulf %36, %38 : vector<8x256xf32>
    %40 = tpu.concatenate %11, %15, %19, %23, %6, %27, %31, %35, %39 in 0 : vector<8x256xf32>, vector<8x256xf32>, vector<8x256xf32>, vector<8x256xf32>, vector<8x256xf32>, vector<8x256xf32>, vector<8x256xf32>, vector<8x256xf32>, vector<8x256xf32> -> vector<72x256xf32>
    %cst_18 = arith.constant dense<0.000000e+00> : vector<8x256xf32>
    %41 = tpu.matmul %7, %40, %cst_18 {dimension_numbers = #tpu.dot_dimension_numbers<[1], [0], [0], [1], [0, 0, 1, 1], [], []>} : vector<8x72xf32>, vector<72x256xf32>, vector<8x256xf32> -> vector<8x256xf32>
    %c0_19 = arith.constant 0 : index
    %c0_20 = arith.constant 0 : index
    %42 = vector.load %arg6[%c0_19, %c0_20] : memref<8x1xf32, #tpu.memory_space<vmem>>, vector<8x1xf32>
    %43 = vector.broadcast %42 : vector<8x1xf32> to vector<8x256xf32>
    %44 = arith.addf %41, %43 : vector<8x256xf32>
    %cst_21 = arith.constant 0.000000e+00 : f32
    %45 = vector.broadcast %cst_21 : f32 to vector<8x256xf32>
    %46 = arith.maximumf %44, %45 : vector<8x256xf32>
    %c0_22 = arith.constant 0 : index
    %c0_23 = arith.constant 0 : index
    %47 = vector.load %arg7[%c0_22, %c0_23] : memref<8x72xf32, #tpu.memory_space<vmem>>, vector<8x72xf32>
    %c17_i32_24 = arith.constant 17 : i32
    %48 = tpu.dynamic_rotate %46 by %c17_i32_24 dim 1 : vector<8x256xf32>, i32 -> vector<8x256xf32>
    %c0_25 = arith.constant 0 : index
    %c0_26 = arith.constant 0 : index
    %49 = vector.load %arg4[%c0_25, %c0_26] : memref<9x256xf32, #tpu.memory_space<vmem>>, vector<1x256xf32>
    %50 = vector.broadcast %49 : vector<1x256xf32> to vector<8x256xf32>
    %51 = arith.mulf %48, %50 : vector<8x256xf32>
    %c16_i32_27 = arith.constant 16 : i32
    %52 = tpu.dynamic_rotate %46 by %c16_i32_27 dim 1 : vector<8x256xf32>, i32 -> vector<8x256xf32>
    %c1_28 = arith.constant 1 : index
    %c0_29 = arith.constant 0 : index
    %53 = vector.load %arg4[%c1_28, %c0_29] : memref<9x256xf32, #tpu.memory_space<vmem>>, vector<1x256xf32>
    %54 = vector.broadcast %53 : vector<1x256xf32> to vector<8x256xf32>
    %55 = arith.mulf %52, %54 : vector<8x256xf32>
    %c15_i32_30 = arith.constant 15 : i32
    %56 = tpu.dynamic_rotate %46 by %c15_i32_30 dim 1 : vector<8x256xf32>, i32 -> vector<8x256xf32>
    %c2_31 = arith.constant 2 : index
    %c0_32 = arith.constant 0 : index
    %57 = vector.load %arg4[%c2_31, %c0_32] : memref<9x256xf32, #tpu.memory_space<vmem>>, vector<1x256xf32>
    %58 = vector.broadcast %57 : vector<1x256xf32> to vector<8x256xf32>
    %59 = arith.mulf %56, %58 : vector<8x256xf32>
    %c1_i32_33 = arith.constant 1 : i32
    %60 = tpu.dynamic_rotate %46 by %c1_i32_33 dim 1 : vector<8x256xf32>, i32 -> vector<8x256xf32>
    %c3_34 = arith.constant 3 : index
    %c0_35 = arith.constant 0 : index
    %61 = vector.load %arg4[%c3_34, %c0_35] : memref<9x256xf32, #tpu.memory_space<vmem>>, vector<1x256xf32>
    %62 = vector.broadcast %61 : vector<1x256xf32> to vector<8x256xf32>
    %63 = arith.mulf %60, %62 : vector<8x256xf32>
    %c255_i32_36 = arith.constant 255 : i32
    %64 = tpu.dynamic_rotate %46 by %c255_i32_36 dim 1 : vector<8x256xf32>, i32 -> vector<8x256xf32>
    %c5_37 = arith.constant 5 : index
    %c0_38 = arith.constant 0 : index
    %65 = vector.load %arg4[%c5_37, %c0_38] : memref<9x256xf32, #tpu.memory_space<vmem>>, vector<1x256xf32>
    %66 = vector.broadcast %65 : vector<1x256xf32> to vector<8x256xf32>
    %67 = arith.mulf %64, %66 : vector<8x256xf32>
    %c241_i32_39 = arith.constant 241 : i32
    %68 = tpu.dynamic_rotate %46 by %c241_i32_39 dim 1 : vector<8x256xf32>, i32 -> vector<8x256xf32>
    %c6_40 = arith.constant 6 : index
    %c0_41 = arith.constant 0 : index
    %69 = vector.load %arg4[%c6_40, %c0_41] : memref<9x256xf32, #tpu.memory_space<vmem>>, vector<1x256xf32>
    %70 = vector.broadcast %69 : vector<1x256xf32> to vector<8x256xf32>
    %71 = arith.mulf %68, %70 : vector<8x256xf32>
    %c240_i32_42 = arith.constant 240 : i32
    %72 = tpu.dynamic_rotate %46 by %c240_i32_42 dim 1 : vector<8x256xf32>, i32 -> vector<8x256xf32>
    %c7_43 = arith.constant 7 : index
    %c0_44 = arith.constant 0 : index
    %73 = vector.load %arg4[%c7_43, %c0_44] : memref<9x256xf32, #tpu.memory_space<vmem>>, vector<1x256xf32>
    %74 = vector.broadcast %73 : vector<1x256xf32> to vector<8x256xf32>
    %75 = arith.mulf %72, %74 : vector<8x256xf32>
    %c239_i32_45 = arith.constant 239 : i32
    %76 = tpu.dynamic_rotate %46 by %c239_i32_45 dim 1 : vector<8x256xf32>, i32 -> vector<8x256xf32>
    %c8_46 = arith.constant 8 : index
    %c0_47 = arith.constant 0 : index
    %77 = vector.load %arg4[%c8_46, %c0_47] : memref<9x256xf32, #tpu.memory_space<vmem>>, vector<1x256xf32>
    %78 = vector.broadcast %77 : vector<1x256xf32> to vector<8x256xf32>
    %79 = arith.mulf %76, %78 : vector<8x256xf32>
    %80 = tpu.concatenate %51, %55, %59, %63, %46, %67, %71, %75, %79 in 0 : vector<8x256xf32>, vector<8x256xf32>, vector<8x256xf32>, vector<8x256xf32>, vector<8x256xf32>, vector<8x256xf32>, vector<8x256xf32>, vector<8x256xf32>, vector<8x256xf32> -> vector<72x256xf32>
    %cst_48 = arith.constant dense<0.000000e+00> : vector<8x256xf32>
    %81 = tpu.matmul %47, %80, %cst_48 {dimension_numbers = #tpu.dot_dimension_numbers<[1], [0], [0], [1], [0, 0, 1, 1], [], []>} : vector<8x72xf32>, vector<72x256xf32>, vector<8x256xf32> -> vector<8x256xf32>
    %c0_49 = arith.constant 0 : index
    %c0_50 = arith.constant 0 : index
    %82 = vector.load %arg8[%c0_49, %c0_50] : memref<8x1xf32, #tpu.memory_space<vmem>>, vector<8x1xf32>
    %83 = vector.broadcast %82 : vector<8x1xf32> to vector<8x256xf32>
    %84 = arith.addf %81, %83 : vector<8x256xf32>
    %cst_51 = arith.constant 0.000000e+00 : f32
    %85 = vector.broadcast %cst_51 : f32 to vector<8x256xf32>
    %86 = arith.maximumf %84, %85 : vector<8x256xf32>
    %c0_52 = arith.constant 0 : index
    %c0_53 = arith.constant 0 : index
    %c0_54 = arith.constant 0 : index
    %87 = vector.load %arg9[%c0_52, %c0_53, %c0_54] : memref<1x8x256xf32, #tpu.memory_space<vmem>>, vector<1x8x256xf32>
    %88 = vector.shape_cast %87 : vector<1x8x256xf32> to vector<8x256xf32>
    %89 = vector.shape_cast %86 : vector<8x256xf32> to vector<1x8x256xf32>
    tpu.vector_store %arg9[%c0_52, %c0_53, %c0_54], %89 {strides = array<i32>} : memref<1x8x256xf32, #tpu.memory_space<vmem>>, vector<1x8x256xf32>,
    return
  }
  func.func @transform_0(%arg0: i32) -> (i32, i32, i32) {
    %c0_i32 = arith.constant 0 : i32
    %c0_i32_0 = arith.constant 0 : i32
    %c0_i32_1 = arith.constant 0 : i32
    return %arg0, %c0_i32, %c0_i32_0 : i32, i32, i32
  }
  func.func @transform_1(%arg0: i32) -> (i32, i32, i32) {
    %c0_i32 = arith.constant 0 : i32
    %c0_i32_0 = arith.constant 0 : i32
    %c0_i32_1 = arith.constant 0 : i32
    return %arg0, %c0_i32, %c0_i32_0 : i32, i32, i32
  }
  func.func @transform_2(%arg0: i32) -> (i32, i32) {
    %c0_i32 = arith.constant 0 : i32
    %c0_i32_0 = arith.constant 0 : i32
    %c0_i32_1 = arith.constant 0 : i32
    return %c0_i32, %c0_i32_0 : i32, i32
  }
  func.func @transform_3(%arg0: i32) -> (i32, i32) {
    %c0_i32 = arith.constant 0 : i32
    %c0_i32_0 = arith.constant 0 : i32
    %c0_i32_1 = arith.constant 0 : i32
    return %c0_i32, %c0_i32_0 : i32, i32
  }
  func.func @transform_4(%arg0: i32) -> (i32, i32) {
    %c0_i32 = arith.constant 0 : i32
    %c0_i32_0 = arith.constant 0 : i32
    %c0_i32_1 = arith.constant 0 : i32
    return %c0_i32, %c0_i32_0 : i32, i32
  }
  func.func @transform_5(%arg0: i32) -> (i32, i32) {
    %c0_i32 = arith.constant 0 : i32
    %c0_i32_0 = arith.constant 0 : i32
    %c0_i32_1 = arith.constant 0 : i32
    return %c0_i32, %c0_i32_0 : i32, i32
  }
  func.func @transform_6(%arg0: i32) -> (i32, i32) {
    %c0_i32 = arith.constant 0 : i32
    %c0_i32_0 = arith.constant 0 : i32
    %c0_i32_1 = arith.constant 0 : i32
    return %c0_i32, %c0_i32_0 : i32, i32
  }
  func.func @transform_7(%arg0: i32) -> (i32, i32) {
    %c0_i32 = arith.constant 0 : i32
    %c0_i32_0 = arith.constant 0 : i32
    %c0_i32_1 = arith.constant 0 : i32
    return %c0_i32, %c0_i32_0 : i32, i32
  }
  func.func @transform_8(%arg0: i32) -> (i32, i32, i32) {
    %c0_i32 = arith.constant 0 : i32
    %c0_i32_0 = arith.constant 0 : i32
    %c0_i32_1 = arith.constant 0 : i32
    return %arg0, %c0_i32, %c0_i32_0 : i32, i32, i32
  }
}

</mosaic_0001>

<llo_original>
// kernel: up_forward.1
$region0: #{up_forward.1}
  #allocation0 [shape = 'u32[]', space=smem, size = 0x4, offset = 0x4, fixed_abs, tag = 'smem constant byte address 0x4 - core index']
  #allocation1 [shape = 'u32[144,128]{1,0:T(1,128)}', space=vmem, size = 0x12000, scoped, tag = 'internal scratch']
  %s0 = inlined_call_operand.vmem [shape: f32[2,4,64], index: 0, kind: input, shape index: {}]
  %s1 = inlined_call_operand.vmem [shape: f32[2,4,256], index: 1, kind: input, shape index: {}]
  %s2 = inlined_call_operand.vmem [shape: f32[64,256], index: 2, kind: input, shape index: {}]
  %s3 = inlined_call_operand.vmem [shape: f32[9,256], index: 3, kind: input, shape index: {}]
  %s4 = inlined_call_operand.vmem [shape: f32[8,72], index: 4, kind: input, shape index: {}]
  %s5 = inlined_call_operand.vmem [shape: f32[8,1], index: 5, kind: input, shape index: {}]
  %s6 = inlined_call_operand.vmem [shape: f32[8,72], index: 6, kind: input, shape index: {}]
  %s7 = inlined_call_operand.vmem [shape: f32[8,1], index: 7, kind: input, shape index: {}]
  %s8 = inlined_call_operand.vmem [shape: f32[2,8,256], index: 8, kind: output, shape index: {}]
  %s9 = sld [smem:[#allocation0]]
  $region65: #{up_forward.1} parent=0
    _
  %s11 = ssub.s32 1, %s9
  %s12 = scalar_select 0, %s11, %s9
  loop: start=0, step=1, limit=4
  $region2: #{up_forward.1} parent=0 // loop_pre_header
    _
  $region3: #{up_forward.1} parent=0 // loop_header
    %s14 = sphi 0, %s18
    %p15 = scmp.ge.s32.totalorder %s14, 4
    %s24 = sphi 0, %s26
    %s27 = sphi 0, %s24
    %s28 = sphi 0, %s27
    %s44 = sphi 0, %s28
    %s50 = sphi 0, %s52
    %s53 = sphi 0, %s50
    %s54 = sphi 0, %s53
    %s70 = sphi 0, %s54
    %s74 = sphi 0, %s74
    %s76 = sphi 0, %s74
    %s77 = sphi 0, %s76
    %s91 = sphi 0, %s77
    %s95 = sphi 0, %s95
    %s97 = sphi 0, %s95
    %s98 = sphi 0, %s97
    %s112 = sphi 0, %s98
    %s116 = sphi 0, %s116
    %s118 = sphi 0, %s116
    %s119 = sphi 0, %s118
    %s133 = sphi 0, %s119
    %s137 = sphi 0, %s137
    %s139 = sphi 0, %s137
    %s140 = sphi 0, %s139
    %s154 = sphi 0, %s140
    %s158 = sphi 0, %s158
    %s160 = sphi 0, %s158
    %s161 = sphi 0, %s160
    %s175 = sphi 0, %s161
    %s179 = sphi 0, %s179
    %s181 = sphi 0, %s179
    %s182 = sphi 0, %s181
    %s196 = sphi 0, %s182
    %s202 = sphi 0, %s204
    %s205 = sphi 0, %s202
    %s206 = sphi 0, %s205
    %s222 = sphi 0, %s206
  $region4: #{up_forward.1} parent=0 // loop_header_branch
    %17 = sbr.rel (%p15) target = $region8
  $region5: #{up_forward.1} parent=0 // loop_body
    %s19 = ssub.s32 %s14, 1
    %s20 = ssub.s32 %s14, 2
    %s21 = sadd.s32 %s14, 1
    %s22 = ssub.s32 %s14, %s21
    %p23 = scmp.eq.s32.totalorder %s22, 0
    %s25 = sadd.s32 %s24, 1
    %s26 = scalar_select %p23, %s24, %s25
    %p29 = pneg %p23
    %p30 = scmp.eq.s32.totalorder %s14, 1
    %p31 = por %p29, %p30
    %p32 = scmp.ne.s32.totalorder %s24, %s27
    %p33 = scmp.eq.s32.totalorder %s14, 0
    %p34 = por %p32, %p33
    %p35 = scmp.ne.s32.totalorder %s24, %s27
    %p36 = scmp.eq.s32.totalorder %s19, 1
    %p37 = por %p35, %p36
    %p38 = scmp.ne.s32.totalorder %s27, %s28
    %p39 = scmp.eq.s32.totalorder %s19, 0
    %p40 = por %p38, %p39
    %p41 = scmp.ne.s32.totalorder %s27, %s28
    %p42 = scmp.eq.s32.totalorder %s20, 1
    %p43 = por %p41, %p42
    %p45 = scmp.ne.s32.totalorder %s28, %s44
    %p46 = scmp.eq.s32.totalorder %s20, 0
    %p47 = por %p45, %p46
    %s48 = ssub.s32 %s14, %s21
    %p49 = scmp.eq.s32.totalorder %s48, 0
    %s51 = sadd.s32 %s50, 1
    %s52 = scalar_select %p49, %s50, %s51
    %p55 = pneg %p49
    %p56 = scmp.eq.s32.totalorder %s14, 1
    %p57 = por %p55, %p56
    %p58 = scmp.ne.s32.totalorder %s50, %s53
    %p59 = scmp.eq.s32.totalorder %s14, 0
    %p60 = por %p58, %p59
    %p61 = scmp.ne.s32.totalorder %s50, %s53
    %p62 = scmp.eq.s32.totalorder %s19, 1
    %p63 = por %p61, %p62
    %p64 = scmp.ne.s32.totalorder %s53, %s54
    %p65 = scmp.eq.s32.totalorder %s19, 0
    %p66 = por %p64, %p65
    %p67 = scmp.ne.s32.totalorder %s53, %s54
    %p68 = scmp.eq.s32.totalorder %s20, 1
    %p69 = por %p67, %p68
    %p71 = scmp.ne.s32.totalorder %s54, %s70
    %p72 = scmp.eq.s32.totalorder %s20, 0
    %p73 = por %p71, %p72
    %s75 = sadd.s32 %s74, 1
    %p78 = scmp.eq.s32.totalorder %s14, 1
    %p79 = scmp.ne.s32.totalorder %s74, %s76
    %p80 = scmp.eq.s32.totalorder %s14, 0
    %p81 = por %p79, %p80
    %p82 = scmp.ne.s32.totalorder %s74, %s76
    %p83 = scmp.eq.s32.totalorder %s19, 1
    %p84 = por %p82, %p83
    %p85 = scmp.ne.s32.totalorder %s76, %s77
    %p86 = scmp.eq.s32.totalorder %s19, 0
    %p87 = por %p85, %p86
    %p88 = scmp.ne.s32.totalorder %s76, %s77
    %p89 = scmp.eq.s32.totalorder %s20, 1
    %p90 = por %p88, %p89
    %p92 = scmp.ne.s32.totalorder %s77, %s91
    %p93 = scmp.eq.s32.totalorder %s20, 0
    %p94 = por %p92, %p93
    %s96 = sadd.s32 %s95, 1
    %p99 = scmp.eq.s32.totalorder %s14, 1
    %p100 = scmp.ne.s32.totalorder %s95, %s97
    %p101 = scmp.eq.s32.totalorder %s14, 0
    %p102 = por %p100, %p101
    %p103 = scmp.ne.s32.totalorder %s95, %s97
    %p104 = scmp.eq.s32.totalorder %s19, 1
    %p105 = por %p103, %p104
    %p106 = scmp.ne.s32.totalorder %s97, %s98
    %p107 = scmp.eq.s32.totalorder %s19, 0
    %p108 = por %p106, %p107
    %p109 = scmp.ne.s32.totalorder %s97, %s98
    %p110 = scmp.eq.s32.totalorder %s20, 1
    %p111 = por %p109, %p110
    %p113 = scmp.ne.s32.totalorder %s98, %s112
    %p114 = scmp.eq.s32.totalorder %s20, 0
    %p115 = por %p113, %p114
    %s117 = sadd.s32 %s116, 1
    %p120 = scmp.eq.s32.totalorder %s14, 1
    %p121 = scmp.ne.s32.totalorder %s116, %s118
    %p122 = scmp.eq.s32.totalorder %s14, 0
    %p123 = por %p121, %p122
    %p124 = scmp.ne.s32.totalorder %s116, %s118
    %p125 = scmp.eq.s32.totalorder %s19, 1
    %p126 = por %p124, %p125
    %p127 = scmp.ne.s32.totalorder %s118, %s119
    %p128 = scmp.eq.s32.totalorder %s19, 0
    %p129 = por %p127, %p128
    %p130 = scmp.ne.s32.totalorder %s118, %s119
    %p131 = scmp.eq.s32.totalorder %s20, 1
    %p132 = por %p130, %p131
    %p134 = scmp.ne.s32.totalorder %s119, %s133
    %p135 = scmp.eq.s32.totalorder %s20, 0
    %p136 = por %p134, %p135
    %s138 = sadd.s32 %s137, 1
    %p141 = scmp.eq.s32.totalorder %s14, 1
    %p142 = scmp.ne.s32.totalorder %s137, %s139
    %p143 = scmp.eq.s32.totalorder %s14, 0
    %p144 = por %p142, %p143
    %p145 = scmp.ne.s32.totalorder %s137, %s139
    %p146 = scmp.eq.s32.totalorder %s19, 1
    %p147 = por %p145, %p146
    %p148 = scmp.ne.s32.totalorder %s139, %s140
    %p149 = scmp.eq.s32.totalorder %s19, 0
    %p150 = por %p148, %p149
    %p151 = scmp.ne.s32.totalorder %s139, %s140
    %p152 = scmp.eq.s32.totalorder %s20, 1
    %p153 = por %p151, %p152
    %p155 = scmp.ne.s32.totalorder %s140, %s154
    %p156 = scmp.eq.s32.totalorder %s20, 0
    %p157 = por %p155, %p156
    %s159 = sadd.s32 %s158, 1
    %p162 = scmp.eq.s32.totalorder %s14, 1
    %p163 = scmp.ne.s32.totalorder %s158, %s160
    %p164 = scmp.eq.s32.totalorder %s14, 0
    %p165 = por %p163, %p164
    %p166 = scmp.ne.s32.totalorder %s158, %s160
    %p167 = scmp.eq.s32.totalorder %s19, 1
    %p168 = por %p166, %p167
    %p169 = scmp.ne.s32.totalorder %s160, %s161
    %p170 = scmp.eq.s32.totalorder %s19, 0
    %p171 = por %p169, %p170
    %p172 = scmp.ne.s32.totalorder %s160, %s161
    %p173 = scmp.eq.s32.totalorder %s20, 1
    %p174 = por %p172, %p173
    %p176 = scmp.ne.s32.totalorder %s161, %s175
    %p177 = scmp.eq.s32.totalorder %s20, 0
    %p178 = por %p176, %p177
    %s180 = sadd.s32 %s179, 1
    %p183 = scmp.eq.s32.totalorder %s14, 1
    %p184 = scmp.ne.s32.totalorder %s179, %s181
    %p185 = scmp.eq.s32.totalorder %s14, 0
    %p186 = por %p184, %p185
    %p187 = scmp.ne.s32.totalorder %s179, %s181
    %p188 = scmp.eq.s32.totalorder %s19, 1
    %p189 = por %p187, %p188
    %p190 = scmp.ne.s32.totalorder %s181, %s182
    %p191 = scmp.eq.s32.totalorder %s19, 0
    %p192 = por %p190, %p191
    %p193 = scmp.ne.s32.totalorder %s181, %s182
    %p194 = scmp.eq.s32.totalorder %s20, 1
    %p195 = por %p193, %p194
    %p197 = scmp.ne.s32.totalorder %s182, %s196
    %p198 = scmp.eq.s32.totalorder %s20, 0
    %p199 = por %p197, %p198
    %s200 = ssub.s32 %s14, %s21
    %p201 = scmp.eq.s32.totalorder %s200, 0
    %s203 = sadd.s32 %s202, 1
    %s204 = scalar_select %p201, %s202, %s203
    %p207 = pneg %p201
    %p208 = scmp.eq.s32.totalorder %s14, 1
    %p209 = por %p207, %p208
    %p210 = scmp.ne.s32.totalorder %s202, %s205
    %p211 = scmp.eq.s32.totalorder %s14, 0
    %p212 = por %p210, %p211
    %p213 = scmp.ne.s32.totalorder %s202, %s205
    %p214 = scmp.eq.s32.totalorder %s19, 1
    %p215 = por %p213, %p214
    %p216 = scmp.ne.s32.totalorder %s205, %s206
    %p217 = scmp.eq.s32.totalorder %s19, 0
    %p218 = por %p216, %p217
    %p219 = scmp.ne.s32.totalorder %s205, %s206
    %p220 = scmp.eq.s32.totalorder %s20, 1
    %p221 = por %p219, %p220
    %p223 = scmp.ne.s32.totalorder %s206, %s222
    %p224 = scmp.eq.s32.totalorder %s20, 0
    %p225 = por %p223, %p224
    %p226 = scmp.le.s32.totalorder 1, %s14
    %p227 = scmp.lt.s32.totalorder %s14, 3
    %p228 = pnand %p226, %p227
    %p229 = pneg %p228
    // Predicated region
    $region9: #{up_forward.1} parent=5 // pred_check
      _
    $region10: #{up_forward.1} parent=5 // pred_check_branch
      %231 = sbr.rel (%p228) target = $region12
    $region11: #{up_forward.1} parent=5 // pred_region
      %s232 = ssub.s32 %s14, 1
      // Predicated region
      $region13: #{up_forward.1} parent=11 // pred_check
        %p233 = pneg %p87
      $region14: #{up_forward.1} parent=11 // pred_check_branch
        %235 = sbr.rel (%p233) target = $region16
      $region15: #{up_forward.1} parent=11 // pred_region
        _
      $region16: #{up_forward.1} parent=11 // pred_fallthru
        _
      // Predicated region
      $region17: #{up_forward.1} parent=11 // pred_check
        %p236 = pneg %p108
      $region18: #{up_forward.1} parent=11 // pred_check_branch
        %238 = sbr.rel (%p236) target = $region20
      $region19: #{up_forward.1} parent=11 // pred_region
        _
      $region20: #{up_forward.1} parent=11 // pred_fallthru
        _
      // Predicated region
      $region21: #{up_forward.1} parent=11 // pred_check
        %p239 = pneg %p129
      $region22: #{up_forward.1} parent=11 // pred_check_branch
        %241 = sbr.rel (%p239) target = $region24
      $region23: #{up_forward.1} parent=11 // pred_region
        _
      $region24: #{up_forward.1} parent=11 // pred_fallthru
        _
      // Predicated region
      $region25: #{up_forward.1} parent=11 // pred_check
        %p242 = pneg %p150
      $region26: #{up_forward.1} parent=11 // pred_check_branch
        %244 = sbr.rel (%p242) target = $region28
      $region27: #{up_forward.1} parent=11 // pred_region
        _
      $region28: #{up_forward.1} parent=11 // pred_fallthru
        _
      // Predicated region
      $region29: #{up_forward.1} parent=11 // pred_check
        %p245 = pneg %p171
      $region30: #{up_forward.1} parent=11 // pred_check_branch
        %247 = sbr.rel (%p245) target = $region32
      $region31: #{up_forward.1} parent=11 // pred_region
        _
      $region32: #{up_forward.1} parent=11 // pred_fallthru
        _
      // Predicated region
      $region33: #{up_forward.1} parent=11 // pred_check
        %p248 = pneg %p192
      $region34: #{up_forward.1} parent=11 // pred_check_branch
        %250 = sbr.rel (%p248) target = $region36
      $region35: #{up_forward.1} parent=11 // pred_region
        _
      $region36: #{up_forward.1} parent=11 // pred_fallthru
        _
    $region12: #{up_forward.1} parent=5 // pred_fallthru
      _
    %p251 = scmp.lt.s32.totalorder %s14, 2
    // Predicated region
    $region37: #{up_forward.1} parent=5 // pred_check
      %p252 = pneg %p251
    $region38: #{up_forward.1} parent=5 // pred_check_branch
      %254 = sbr.rel (%p252) target = $region40
    $region39: #{up_forward.1} parent=5 // pred_region
      // Predicated region
      $region41: #{up_forward.1} parent=39 // pred_check
        %p255 = pneg %p34
      $region42: #{up_forward.1} parent=39 // pred_check_branch
        %257 = sbr.rel (%p255) target = $region44
      $region43: #{up_forward.1} parent=39 // pred_region
        %p258 = scmp.lt.s32.totalorder %s14, 1
        %s259 = scalar_select %p258, %s14, 1
        %s260 = smul.addr %s259, 4
        %s261 = scalar_lea.vmem %s0, %s260
      $region44: #{up_forward.1} parent=39 // pred_fallthru
        _
      // Predicated region
      $region45: #{up_forward.1} parent=39 // pred_check
        %p262 = pneg %p60
      $region46: #{up_forward.1} parent=39 // pred_check_branch
        %264 = sbr.rel (%p262) target = $region48
      $region47: #{up_forward.1} parent=39 // pred_region
        %p265 = scmp.lt.s32.totalorder %s14, 1
        %s266 = scalar_select %p265, %s14, 1
        %s267 = smul.addr %s266, 2
        %s268 = smul.addr %s267, 4
        %s269 = scalar_lea.vmem %s1, %s268
      $region48: #{up_forward.1} parent=39 // pred_fallthru
        _
    $region40: #{up_forward.1} parent=5 // pred_fallthru
      _
    %p270 = scmp.le.s32.totalorder 1, %s14
    %p271 = scmp.lt.s32.totalorder %s14, 3
    %p272 = pnand %p270, %p271
    %p273 = pneg %p272
    // Predicated region
    $region49: #{up_forward.1} parent=5 // pred_check
      _
    $region50: #{up_forward.1} parent=5 // pred_check_branch
      %275 = sbr.rel (%p272) target = $region52
    $region51: #{up_forward.1} parent=5 // pred_region
      %s276 = ssub.s32 %s14, 1
      %p277 = scmp.lt.s32.totalorder %s19, 1
      %s278 = scalar_select %p277, %s19, 1
      %s279 = smul.addr %s278, 4
      %s280 = scalar_lea.vmem %s0, %s279
      %p281 = pneg %p40
      %p282 = pneg %p37
      %p283 = scmp.lt.s32.totalorder %s19, 1
      %s284 = scalar_select %p283, %s19, 1
      %s285 = smul.addr %s284, 2
      %s286 = smul.addr %s285, 4
      %s287 = scalar_lea.vmem %s1, %s286
      %p288 = pneg %p66
      %p289 = pneg %p63
      %p290 = pneg %p87
      %p291 = pneg %p84
      %p292 = pneg %p108
      %p293 = pneg %p105
      %p294 = pneg %p129
      %p295 = pneg %p126
      %p296 = pneg %p150
      %p297 = pneg %p147
      %p298 = pneg %p171
      %p299 = pneg %p168
      %p300 = pneg %p192
      %p301 = pneg %p189
      %p302 = pneg %p218
      %p303 = pneg %p215
      %p304 = scmp.lt.s32.totalorder %s19, 1
      %s305 = scalar_select %p304, %s19, 1
      %s306 = smul.addr %s305, 2
      %s307 = smul.addr %s306, 8
      %s308 = scalar_lea.vmem %s8, %s307
      %p309 = scmp.lt.s32.totalorder %s19, 1
      %s310 = scalar_select %p309, %s19, 1
      %s311 = smul.addr %s310, 4
      %s312 = scalar_lea.vmem %s0, %s311
      %p313 = scmp.lt.s32.totalorder %s19, 1
      %s314 = scalar_select %p313, %s19, 1
      %s315 = smul.addr %s314, 2
      %s316 = smul.addr %s315, 4
      %s317 = scalar_lea.vmem %s1, %s316
      %p318 = scmp.lt.s32.totalorder %s19, 1
      %s319 = scalar_select %p318, %s19, 1
      %s320 = smul.addr %s319, 2
      %s321 = smul.addr %s320, 8
      %s322 = scalar_lea.vmem %s8, %s321
      %v323 = vld [vmem:[%s312] sm:$0xf]
      %v324 = vld [vmem:[%s2] sm:$0xff]
      %v325 = vld [vmem:[%s2 + $0x8] sm:$0xff]
      %v326 = vld [vmem:[%s2 + $0x10] sm:$0xff]
      %v327 = vld [vmem:[%s2 + $0x18] sm:$0xff]
      %v328 = vld [vmem:[%s2 + $0x20] sm:$0xff]
      %v329 = vld [vmem:[%s2 + $0x28] sm:$0xff]
      %v330 = vld [vmem:[%s2 + $0x30] sm:$0xff]
      %v331 = vld [vmem:[%s2 + $0x38] sm:$0xff]
      %v332 = vld [vmem:[%s2 + $0x40] sm:$0xff]
      %v333 = vld [vmem:[%s2 + $0x48] sm:$0xff]
      %v334 = vld [vmem:[%s2 + $0x50] sm:$0xff]
      %v335 = vld [vmem:[%s2 + $0x58] sm:$0xff]
      %v336 = vld [vmem:[%s2 + $0x60] sm:$0xff]
      %v337 = vld [vmem:[%s2 + $0x68] sm:$0xff]
      %v338 = vld [vmem:[%s2 + $0x70] sm:$0xff]
      %v339 = vld [vmem:[%s2 + $0x78] sm:$0xff]
      %vm340 = vcmask 523264
      %v342 = vsel %vm340, %v323, 0
      %344 = vmatprep.subr.mxu0 %v325
      %345 = vmatpush1.msra.mxu0 %v324
      %346 = vmatprep.subr.mxu0 %v327
      %347 = vmatpush1.msra.mxu0 %v326
      %348 = vmatprep.subr.mxu0 %v329
      %349 = vmatpush1.msra.mxu0 %v328
      %350 = vmatprep.subr.mxu0 %v331
      %351 = vmatpush1.msra.mxu0 %v330
      %352 = vmatprep.subr.mxu0 %v333
      %353 = vmatpush1.msra.mxu0 %v332
      %354 = vmatprep.subr.mxu0 %v335
      %355 = vmatpush1.msra.mxu0 %v334
      %356 = vmatprep.subr.mxu0 %v337
      %357 = vmatpush1.msra.mxu0 %v336
      %358 = vmatprep.subr.mxu0 %v339
      %359 = vmatpush1.msra.mxu0 %v338
      %360 = vmatprep.subr.mxu0 0.0
      %361 = vmatpush1.msra.mxu0 0.0
      %362 = vmatprep.subr.mxu0 0.0
      %363 = vmatpush1.msra.mxu0 0.0
      %364 = vmatprep.subr.mxu0 0.0
      %365 = vmatpush1.msra.mxu0 0.0
      %366 = vmatprep.subr.mxu0 0.0
      %367 = vmatpush1.msra.mxu0 0.0
      %368 = vmatprep.subr.mxu0 0.0
      %369 = vmatpush1.msra.mxu0 0.0
      %370 = vmatprep.subr.mxu0 0.0
      %371 = vmatpush1.msra.mxu0 0.0
      %372 = vmatprep.subr.mxu0 0.0
      %373 = vmatpush1.msra.mxu0 0.0
      %374 = vmatprep.subr.mxu0 0.0
      %375 = vmatpush1.msra.mxu0 0.0
      %376 = vmatprep.subr.mxu0 0.0
      %377 = vmatpush1.msra.mxu0 0.0
      %378 = vmatprep.subr.mxu0 0.0
      %379 = vmatpush1.msra.mxu0 0.0
      %380 = vmatprep.subr.mxu0 0.0
      %381 = vmatpush1.msra.mxu0 0.0
      %382 = vmatprep.subr.mxu0 0.0
      %383 = vmatpush1.msra.mxu0 0.0
      %384 = vmatprep.subr.mxu0 0.0
      %385 = vmatpush1.msra.mxu0 0.0
      %386 = vmatprep.subr.mxu0 0.0
      %387 = vmatpush1.msra.mxu0 0.0
      %388 = vmatprep.subr.mxu0 0.0
      %389 = vmatpush1.msra.mxu0 0.0
      %390 = vmatprep.subr.mxu0 0.0
      %391 = vmatpush1.msra.mxu0 0.0
      %392 = vmatprep.subr.mxu0 0.0
      %393 = vmatpush1.msra.mxu0 0.0
      %394 = vmatprep.subr.mxu0 0.0
      %395 = vmatpush1.msra.mxu0 0.0
      %396 = vmatprep.subr.mxu0 0.0
      %397 = vmatpush1.msra.mxu0 0.0
      %398 = vmatprep.subr.mxu0 0.0
      %399 = vmatpush1.msra.mxu0 0.0
      %400 = vmatprep.subr.mxu0 0.0
      %401 = vmatpush1.msra.mxu0 0.0
      %402 = vmatprep.subr.mxu0 0.0
      %403 = vmatpush1.msra.mxu0 0.0
      %404 = vmatprep.subr.mxu0 0.0
      %405 = vmatpush1.msra.mxu0 0.0
      %406 = vmatprep.subr.mxu0 0.0
      %407 = vmatpush1.msra.mxu0 0.0
      %408 = vmatprep.mubr.f32.mxu0 0.0
      %409 = vmatmul.mubr.f32.gmra.mrb[0].mxu0 %v342
      %v410 = vpop.f32.mrb[0].mxu0
      %v411 = vadd.f32 0.0, %v410
      %v412 = vpop.f32.mrb[0].mxu0
      %v413 = vadd.f32 0.0, %v412
      %414 = vdwg.mxu0
      %v415 = vld [vmem:[%s317] sm:$0xff]
      %v417 = vcombine.high %v415, %v415
      %v421 = vrot.slane %v411, 4
      %v422 = vrot.slane %v413, 4
      %vm425 = vcmask 1043456
      %v426 = vsel %vm425, %v415, %v421
      %v427 = vsel %vm425, %v417, %v422
      %v428 = vld [vmem:[%s4] sm:$0xff]
      %429 = vrot.lane.b32.xlu0 %v426, 17
      %v430 = vpop.permute.xlu0 %429
      %431 = vrot.lane.b32.xlu0 %v427, 17
      %v432 = vpop.permute.xlu0 %431
      %v433 = vlaneseq
      %v434 = vand.u32 %v433, 127
      %vm435 = vcmp.lt.s32.totalorder %v434, 17
      %v436 = vsel %vm435, %v430, %v432
      %v437 = vsel %vm435, %v432, %v430
      %v438 = vld [vmem:[%s3] ss:$8 sm:$0x3]
      %v440 = vlaneseq
      %v441 = vshrl.u32 %v440, 7
      %v442 = vsub.s32 0, %v441
      %v443 = vrot.slane %v438, %v442
      %v444 = vlaneseq
      %v445 = vshrl.u32 %v444, 7
      %v446 = vsub.s32 1, %v445
      %v447 = vrot.slane %v438, %v446
      %v450 = vmul.f32 %v437, %v443
      %v451 = vmul.f32 %v436, %v447
      %452 = vrot.lane.b32.xlu0 %v426, 16
      %v453 = vpop.permute.xlu0 %452
      %454 = vrot.lane.b32.xlu0 %v427, 16
      %v455 = vpop.permute.xlu0 %454
      %vm456 = vcmp.lt.s32.totalorder %v434, 16
      %v457 = vsel %vm456, %v453, %v455
      %v458 = vsel %vm456, %v455, %v453
      %s459 = scalar_lea.vmem %s3, 1
      %v460 = vld [vmem:[%s459] ss:$8 sm:$0x3]
      %v462 = vlaneseq
      %v463 = vshrl.u32 %v462, 7
      %v464 = vsub.s32 0, %v463
      %v465 = vrot.slane %v460, %v464
      %v466 = vlaneseq
      %v467 = vshrl.u32 %v466, 7
      %v468 = vsub.s32 1, %v467
      %v469 = vrot.slane %v460, %v468
      %v472 = vmul.f32 %v458, %v465
      %v473 = vmul.f32 %v457, %v469
      %474 = vrot.lane.b32.xlu0 %v426, 15
      %v475 = vpop.permute.xlu0 %474
      %476 = vrot.lane.b32.xlu0 %v427, 15
      %v477 = vpop.permute.xlu0 %476
      %vm478 = vcmp.lt.s32.totalorder %v434, 15
      %v479 = vsel %vm478, %v475, %v477
      %v480 = vsel %vm478, %v477, %v475
      %s481 = scalar_lea.vmem %s3, 2
      %v482 = vld [vmem:[%s481] ss:$8 sm:$0x3]
      %v484 = vlaneseq
      %v485 = vshrl.u32 %v484, 7
      %v486 = vsub.s32 0, %v485
      %v487 = vrot.slane %v482, %v486
      %v488 = vlaneseq
      %v489 = vshrl.u32 %v488, 7
      %v490 = vsub.s32 1, %v489
      %v491 = vrot.slane %v482, %v490
      %v494 = vmul.f32 %v480, %v487
      %v495 = vmul.f32 %v479, %v491
      %496 = vrot.lane.b32.xlu0 %v426, 1
      %v497 = vpop.permute.xlu0 %496
      %498 = vrot.lane.b32.xlu0 %v427, 1
      %v499 = vpop.permute.xlu0 %498
      %vm500 = vcmp.lt.s32.totalorder %v434, 1
      %v501 = vsel %vm500, %v497, %v499
      %v502 = vsel %vm500, %v499, %v497
      %s503 = scalar_lea.vmem %s3, 3
      %v504 = vld [vmem:[%s503] ss:$8 sm:$0x3]
      %v506 = vlaneseq
      %v507 = vshrl.u32 %v506, 7
      %v508 = vsub.s32 0, %v507
      %v509 = vrot.slane %v504, %v508
      %v510 = vlaneseq
      %v511 = vshrl.u32 %v510, 7
      %v512 = vsub.s32 1, %v511
      %v513 = vrot.slane %v504, %v512
      %v516 = vmul.f32 %v502, %v509
      %v517 = vmul.f32 %v501, %v513
      %518 = vrot.lane.b32.xlu0 %v426, 127
      %v519 = vpop.permute.xlu0 %518
      %520 = vrot.lane.b32.xlu0 %v427, 127
      %v521 = vpop.permute.xlu0 %520
      %vm522 = vcmp.lt.s32.totalorder %v434, 127
      %v523 = vsel %vm522, %v519, %v521
      %v524 = vsel %vm522, %v521, %v519
      %s525 = scalar_lea.vmem %s3, 5
      %v526 = vld [vmem:[%s525] ss:$8 sm:$0x3]
      %v528 = vlaneseq
      %v529 = vshrl.u32 %v528, 7
      %v530 = vsub.s32 0, %v529
      %v531 = vrot.slane %v526, %v530
      %v532 = vlaneseq
      %v533 = vshrl.u32 %v532, 7
      %v534 = vsub.s32 1, %v533
      %v535 = vrot.slane %v526, %v534
      %v538 = vmul.f32 %v523, %v531
      %v539 = vmul.f32 %v524, %v535
      %540 = vrot.lane.b32.xlu0 %v426, 113
      %v541 = vpop.permute.xlu0 %540
      %542 = vrot.lane.b32.xlu0 %v427, 113
      %v543 = vpop.permute.xlu0 %542
      %vm544 = vcmp.lt.s32.totalorder %v434, 113
      %v545 = vsel %vm544, %v541, %v543
      %v546 = vsel %vm544, %v543, %v541
      %s547 = scalar_lea.vmem %s3, 6
      %v548 = vld [vmem:[%s547] ss:$8 sm:$0x3]
      %v550 = vlaneseq
      %v551 = vshrl.u32 %v550, 7
      %v552 = vsub.s32 0, %v551
      %v553 = vrot.slane %v548, %v552
      %v554 = vlaneseq
      %v555 = vshrl.u32 %v554, 7
      %v556 = vsub.s32 1, %v555
      %v557 = vrot.slane %v548, %v556
      %v560 = vmul.f32 %v545, %v553
      %v561 = vmul.f32 %v546, %v557
      %562 = vrot.lane.b32.xlu0 %v426, 112
      %v563 = vpop.permute.xlu0 %562
      %564 = vrot.lane.b32.xlu0 %v427, 112
      %v565 = vpop.permute.xlu0 %564
      %vm566 = vcmp.lt.s32.totalorder %v434, 112
      %v567 = vsel %vm566, %v563, %v565
      %v568 = vsel %vm566, %v565, %v563
      %s569 = scalar_lea.vmem %s3, 7
      %v570 = vld [vmem:[%s569] ss:$8 sm:$0x3]
      %v572 = vlaneseq
      %v573 = vshrl.u32 %v572, 7
      %v574 = vsub.s32 0, %v573
      %v575 = vrot.slane %v570, %v574
      %v576 = vlaneseq
      %v577 = vshrl.u32 %v576, 7
      %v578 = vsub.s32 1, %v577
      %v579 = vrot.slane %v570, %v578
      %v582 = vmul.f32 %v567, %v575
      %v583 = vmul.f32 %v568, %v579
      %584 = vrot.lane.b32.xlu0 %v426, 111
      %v585 = vpop.permute.xlu0 %584
      %586 = vrot.lane.b32.xlu0 %v427, 111
      %v587 = vpop.permute.xlu0 %586
      %vm588 = vcmp.lt.s32.totalorder %v434, 111
      %v589 = vsel %vm588, %v585, %v587
      %v590 = vsel %vm588, %v587, %v585
      %s591 = scalar_lea.vmem %s3, 16
      %v592 = vld [vmem:[%s591] ss:$8 sm:$0x3]
      %v594 = vlaneseq
      %v595 = vshrl.u32 %v594, 7
      %v596 = vsub.s32 0, %v595
      %v597 = vrot.slane %v592, %v596
      %v598 = vlaneseq
      %v599 = vshrl.u32 %v598, 7
      %v600 = vsub.s32 1, %v599
      %v601 = vrot.slane %v592, %v600
      %v604 = vmul.f32 %v589, %v597
      %v605 = vmul.f32 %v590, %v601
      %v606 = vld [vmem:[%s5] sm:$0xff]
      %608 = vset.pattern.permute.xlu0 0
      %609 = vperm.xlu0 %608, %v606
      %v610 = vpop.permute.xlu0 %609
      %vm612 = vcmask 588800
      %v614 = vsel %vm612, %v428, 0
      %616 = vmatprep.subr.mxu0 %v451
      %617 = vmatpush1.msra.mxu0 %v450
      %618 = vmatprep.subr.mxu0 %v473
      %619 = vmatpush1.msra.mxu0 %v472
      %620 = vmatprep.subr.mxu0 %v495
      %621 = vmatpush1.msra.mxu0 %v494
      %622 = vmatprep.subr.mxu0 %v517
      %623 = vmatpush1.msra.mxu0 %v516
      %624 = vmatprep.subr.mxu0 %v427
      %625 = vmatpush1.msra.mxu0 %v426
      %626 = vmatprep.subr.mxu0 %v539
      %627 = vmatpush1.msra.mxu0 %v538
      %628 = vmatprep.subr.mxu0 %v561
      %629 = vmatpush1.msra.mxu0 %v560
      %630 = vmatprep.subr.mxu0 %v583
      %631 = vmatpush1.msra.mxu0 %v582
      %632 = vmatprep.subr.mxu0 %v605
      %633 = vmatpush1.msra.mxu0 %v604
      %634 = vmatprep.subr.mxu0 0.0
      %635 = vmatpush1.msra.mxu0 0.0
      %636 = vmatprep.subr.mxu0 0.0
      %637 = vmatpush1.msra.mxu0 0.0
      %638 = vmatprep.subr.mxu0 0.0
      %639 = vmatpush1.msra.mxu0 0.0
      %640 = vmatprep.subr.mxu0 0.0
      %641 = vmatpush1.msra.mxu0 0.0
      %642 = vmatprep.subr.mxu0 0.0
      %643 = vmatpush1.msra.mxu0 0.0
      %644 = vmatprep.subr.mxu0 0.0
      %645 = vmatpush1.msra.mxu0 0.0
      %646 = vmatprep.subr.mxu0 0.0
      %647 = vmatpush1.msra.mxu0 0.0
      %648 = vmatprep.subr.mxu0 0.0
      %649 = vmatpush1.msra.mxu0 0.0
      %650 = vmatprep.subr.mxu0 0.0
      %651 = vmatpush1.msra.mxu0 0.0
      %652 = vmatprep.subr.mxu0 0.0
      %653 = vmatpush1.msra.mxu0 0.0
      %654 = vmatprep.subr.mxu0 0.0
      %655 = vmatpush1.msra.mxu0 0.0
      %656 = vmatprep.subr.mxu0 0.0
      %657 = vmatpush1.msra.mxu0 0.0
      %658 = vmatprep.subr.mxu0 0.0
      %659 = vmatpush1.msra.mxu0 0.0
      %660 = vmatprep.subr.mxu0 0.0
      %661 = vmatpush1.msra.mxu0 0.0
      %662 = vmatprep.subr.mxu0 0.0
      %663 = vmatpush1.msra.mxu0 0.0
      %664 = vmatprep.subr.mxu0 0.0
      %665 = vmatpush1.msra.mxu0 0.0
      %666 = vmatprep.subr.mxu0 0.0
      %667 = vmatpush1.msra.mxu0 0.0
      %668 = vmatprep.subr.mxu0 0.0
      %669 = vmatpush1.msra.mxu0 0.0
      %670 = vmatprep.subr.mxu0 0.0
      %671 = vmatpush1.msra.mxu0 0.0
      %672 = vmatprep.subr.mxu0 0.0
      %673 = vmatpush1.msra.mxu0 0.0
      %674 = vmatprep.subr.mxu0 0.0
      %675 = vmatpush1.msra.mxu0 0.0
      %676 = vmatprep.subr.mxu0 0.0
      %677 = vmatpush1.msra.mxu0 0.0
      %678 = vmatprep.subr.mxu0 0.0
      %679 = vmatpush1.msra.mxu0 0.0
      %680 = vmatprep.mubr.f32.mxu0 0.0
      %681 = vmatmul.mubr.f32.gmra.mrb[0].mxu0 %v614
      %v682 = vpop.f32.mrb[0].mxu0
      %v683 = vadd.f32 %v610, %v682
      %v684 = vpop.f32.mrb[0].mxu0
      %v685 = vadd.f32 %v610, %v684
      %686 = vdwg.mxu0
      %v687 = vmax.f32 %v683, 0.0
      %v688 = vmax.f32 %v685, 0.0
      %v689 = vld [vmem:[%s6] sm:$0xff]
      %690 = vrot.lane.b32.xlu0 %v687, 17
      %v691 = vpop.permute.xlu0 %690
      %692 = vrot.lane.b32.xlu0 %v688, 17
      %v693 = vpop.permute.xlu0 %692
      %v694 = vsel %vm435, %v691, %v693
      %v695 = vsel %vm435, %v693, %v691
      %v696 = vmul.f32 %v695, %v443
      %v697 = vmul.f32 %v694, %v447
      %698 = vrot.lane.b32.xlu0 %v687, 16
      %v699 = vpop.permute.xlu0 %698
      %700 = vrot.lane.b32.xlu0 %v688, 16
      %v701 = vpop.permute.xlu0 %700
      %v702 = vsel %vm456, %v699, %v701
      %v703 = vsel %vm456, %v701, %v699
      %v704 = vmul.f32 %v703, %v465
      %v705 = vmul.f32 %v702, %v469
      %706 = vrot.lane.b32.xlu0 %v687, 15
      %v707 = vpop.permute.xlu0 %706
      %708 = vrot.lane.b32.xlu0 %v688, 15
      %v709 = vpop.permute.xlu0 %708
      %v710 = vsel %vm478, %v707, %v709
      %v711 = vsel %vm478, %v709, %v707
      %v712 = vmul.f32 %v711, %v487
      %v713 = vmul.f32 %v710, %v491
      %714 = vrot.lane.b32.xlu0 %v687, 1
      %v715 = vpop.permute.xlu0 %714
      %716 = vrot.lane.b32.xlu0 %v688, 1
      %v717 = vpop.permute.xlu0 %716
      %v718 = vsel %vm500, %v715, %v717
      %v719 = vsel %vm500, %v717, %v715
      %v720 = vmul.f32 %v719, %v509
      %v721 = vmul.f32 %v718, %v513
      %722 = vrot.lane.b32.xlu0 %v687, 127
      %v723 = vpop.permute.xlu0 %722
      %724 = vrot.lane.b32.xlu0 %v688, 127
      %v725 = vpop.permute.xlu0 %724
      %v726 = vsel %vm522, %v723, %v725
      %v727 = vsel %vm522, %v725, %v723
      %v728 = vmul.f32 %v726, %v531
      %v729 = vmul.f32 %v727, %v535
      %730 = vrot.lane.b32.xlu0 %v687, 113
      %v731 = vpop.permute.xlu0 %730
      %732 = vrot.lane.b32.xlu0 %v688, 113
      %v733 = vpop.permute.xlu0 %732
      %v734 = vsel %vm544, %v731, %v733
      %v735 = vsel %vm544, %v733, %v731
      %v736 = vmul.f32 %v734, %v553
      %v737 = vmul.f32 %v735, %v557
      %738 = vrot.lane.b32.xlu0 %v687, 112
      %v739 = vpop.permute.xlu0 %738
      %740 = vrot.lane.b32.xlu0 %v688, 112
      %v741 = vpop.permute.xlu0 %740
      %v742 = vsel %vm566, %v739, %v741
      %v743 = vsel %vm566, %v741, %v739
      %v744 = vmul.f32 %v742, %v575
      %v745 = vmul.f32 %v743, %v579
      %746 = vrot.lane.b32.xlu0 %v687, 111
      %v747 = vpop.permute.xlu0 %746
      %748 = vrot.lane.b32.xlu0 %v688, 111
      %v749 = vpop.permute.xlu0 %748
      %v750 = vsel %vm588, %v747, %v749
      %v751 = vsel %vm588, %v749, %v747
      %v752 = vmul.f32 %v750, %v597
      %v753 = vmul.f32 %v751, %v601
      %v754 = vld [vmem:[%s7] sm:$0xff]
      %756 = vset.pattern.permute.xlu0 0
      %757 = vperm.xlu0 %756, %v754
      %v758 = vpop.permute.xlu0 %757
      %v761 = vsel %vm612, %v689, 0
      %763 = vmatprep.subr.mxu0 %v697
      %764 = vmatpush1.msra.mxu0 %v696
      %765 = vmatprep.subr.mxu0 %v705
      %766 = vmatpush1.msra.mxu0 %v704
      %767 = vmatprep.subr.mxu0 %v713
      %768 = vmatpush1.msra.mxu0 %v712
      %769 = vmatprep.subr.mxu0 %v721
      %770 = vmatpush1.msra.mxu0 %v720
      %771 = vmatprep.subr.mxu0 %v688
      %772 = vmatpush1.msra.mxu0 %v687
      %773 = vmatprep.subr.mxu0 %v729
      %774 = vmatpush1.msra.mxu0 %v728
      %775 = vmatprep.subr.mxu0 %v737
      %776 = vmatpush1.msra.mxu0 %v736
      %777 = vmatprep.subr.mxu0 %v745
      %778 = vmatpush1.msra.mxu0 %v744
      %779 = vmatprep.subr.mxu0 %v753
      %780 = vmatpush1.msra.mxu0 %v752
      %781 = vmatprep.subr.mxu0 0.0
      %782 = vmatpush1.msra.mxu0 0.0
      %783 = vmatprep.subr.mxu0 0.0
      %784 = vmatpush1.msra.mxu0 0.0
      %785 = vmatprep.subr.mxu0 0.0
      %786 = vmatpush1.msra.mxu0 0.0
      %787 = vmatprep.subr.mxu0 0.0
      %788 = vmatpush1.msra.mxu0 0.0
      %789 = vmatprep.subr.mxu0 0.0
      %790 = vmatpush1.msra.mxu0 0.0
      %791 = vmatprep.subr.mxu0 0.0
      %792 = vmatpush1.msra.mxu0 0.0
      %793 = vmatprep.subr.mxu0 0.0
      %794 = vmatpush1.msra.mxu0 0.0
      %795 = vmatprep.subr.mxu0 0.0
      %796 = vmatpush1.msra.mxu0 0.0
      %797 = vmatprep.subr.mxu0 0.0
      %798 = vmatpush1.msra.mxu0 0.0
      %799 = vmatprep.subr.mxu0 0.0
      %800 = vmatpush1.msra.mxu0 0.0
      %801 = vmatprep.subr.mxu0 0.0
      %802 = vmatpush1.msra.mxu0 0.0
      %803 = vmatprep.subr.mxu0 0.0
      %804 = vmatpush1.msra.mxu0 0.0
      %805 = vmatprep.subr.mxu0 0.0
      %806 = vmatpush1.msra.mxu0 0.0
      %807 = vmatprep.subr.mxu0 0.0
      %808 = vmatpush1.msra.mxu0 0.0
      %809 = vmatprep.subr.mxu0 0.0
      %810 = vmatpush1.msra.mxu0 0.0
      %811 = vmatprep.subr.mxu0 0.0
      %812 = vmatpush1.msra.mxu0 0.0
      %813 = vmatprep.subr.mxu0 0.0
      %814 = vmatpush1.msra.mxu0 0.0
      %815 = vmatprep.subr.mxu0 0.0
      %816 = vmatpush1.msra.mxu0 0.0
      %817 = vmatprep.subr.mxu0 0.0
      %818 = vmatpush1.msra.mxu0 0.0
      %819 = vmatprep.subr.mxu0 0.0
      %820 = vmatpush1.msra.mxu0 0.0
      %821 = vmatprep.subr.mxu0 0.0
      %822 = vmatpush1.msra.mxu0 0.0
      %823 = vmatprep.subr.mxu0 0.0
      %824 = vmatpush1.msra.mxu0 0.0
      %825 = vmatprep.subr.mxu0 0.0
      %826 = vmatpush1.msra.mxu0 0.0
      %827 = vmatprep.mubr.f32.mxu0 0.0
      %828 = vmatmul.mubr.f32.gmra.mrb[0].mxu0 %v761
      %v829 = vpop.f32.mrb[0].mxu0
      %v830 = vadd.f32 %v758, %v829
      %v831 = vpop.f32.mrb[0].mxu0
      %v832 = vadd.f32 %v758, %v831
      %833 = vdwg.mxu0
      %v834 = vmax.f32 %v830, 0.0
      %v835 = vmax.f32 %v832, 0.0
      %836 = vst [vmem:[%s322] sm:$0xff] %v834
      %837 = vst [vmem:[%s322 + $0x8] sm:$0xff] %v835
      %p838 = scmp.lt.s32.totalorder %s19, 1
      %s839 = scalar_select %p838, %s19, 1
      %s840 = smul.addr %s839, 2
      %s841 = smul.addr %s840, 8
      %s842 = scalar_lea.vmem %s8, %s841
      // Predicated region
      $region53: #{up_forward.1} parent=51 // pred_check
        %p843 = pneg %p215
      $region54: #{up_forward.1} parent=51 // pred_check_branch
        %845 = sbr.rel (%p843) target = $region56
      $region55: #{up_forward.1} parent=51 // pred_region
        _
      $region56: #{up_forward.1} parent=51 // pred_fallthru
        _
    $region52: #{up_forward.1} parent=5 // pred_fallthru
      _
    %p846 = scmp.le.s32.totalorder 2, %s14
    // Predicated region
    $region57: #{up_forward.1} parent=5 // pred_check
      %p847 = pneg %p846
    $region58: #{up_forward.1} parent=5 // pred_check_branch
      %849 = sbr.rel (%p847) target = $region60
    $region59: #{up_forward.1} parent=5 // pred_region
      %s850 = ssub.s32 %s14, 2
      // Predicated region
      $region61: #{up_forward.1} parent=59 // pred_check
        %p851 = pneg %p221
      $region62: #{up_forward.1} parent=59 // pred_check_branch
        %853 = sbr.rel (%p851) target = $region64
      $region63: #{up_forward.1} parent=59 // pred_region
        %p854 = scmp.lt.s32.totalorder %s20, 1
        %s855 = scalar_select %p854, %s20, 1
        %s856 = smul.addr %s855, 2
        %s857 = smul.addr %s856, 8
        %s858 = scalar_lea.vmem %s8, %s857
      $region64: #{up_forward.1} parent=59 // pred_fallthru
        _
    $region60: #{up_forward.1} parent=5 // pred_fallthru
      _
  $region6: #{up_forward.1} parent=0 // loop_footer
    %s18 = sadd.s32 1, %s14
  $region7: #{up_forward.1} parent=0 // loop_footer_branch
    %13 = sbr.rel target = $region3
  $region8: #{up_forward.1} parent=0 // loop_exit
    _

</llo_original>
